<compile_context>
chip_gen: v5e
topology: v5e:2x2
jax: 0.10.0
libtpu: 0.0.40
codegen_flags: <defaults>
</compile_context>

<pallas_src>
import functools

import jax
import jax.numpy as jnp
from jax import lax
from jax.experimental import pallas as pl
from jax.experimental.pallas import tpu as pltpu


def _round_up(x, m):
    return ((x + m - 1) // m) * m


def _vmem_limit(footprint_bytes):
    # Derive the limit from the real footprint (x1.5 + 4 MiB headroom), capped at
    # 48 MiB so >=16 MiB of v7x's 64 MiB/TC stays free; well under v5e/v6e 128 MiB.
    return int(min(48 * 2**20, max(1.5 * footprint_bytes + 4 * 2**20, 16 * 2**20)))


# ---------------------------------------------------------------------------
# Pallas kernel: parameter generation  out_tile = x_emb @ WcatT_tile + bcat_tile
# (the tiny bottleneck matmul x_emb = emb @ WbT + bb is hoisted to the wrapper)
# ---------------------------------------------------------------------------
def _paramgen_kernel(xe_ref, wcT_ref, bc_ref, o_ref):
    y = jnp.dot(xe_ref[...], wcT_ref[...],
                preferred_element_type=jnp.float32) + bc_ref[...]
    o_ref[...] = y.astype(o_ref.dtype)


def pallas_generate_params(x_emb, wcT_pad, bc_pad, tile_n):
    """x_emb (S,Bn); wcT_pad (Bn,N_pad); bc_pad (1,N_pad) -> (S, N_pad)."""
    S, Bn = x_emb.shape
    _, N_pad = wcT_pad.shape
    TN = tile_n
    assert N_pad % TN == 0

    footprint = 4 * (S * Bn + 2 * Bn * TN + 2 * TN + 2 * S * TN)
    return pl.pallas_call(
        _paramgen_kernel,
        out_shape=jax.ShapeDtypeStruct((S, N_pad), jnp.float32),
        grid_spec=pltpu.PrefetchScalarGridSpec(
            num_scalar_prefetch=0,
            grid=(N_pad // TN,),
            in_specs=[
                pl.BlockSpec((S, Bn), lambda j: (0, 0)),     # resident
                pl.BlockSpec((Bn, TN), lambda j: (0, j)),    # tiled over N
                pl.BlockSpec((1, TN), lambda j: (0, j)),
            ],
            out_specs=pl.BlockSpec((S, TN), lambda j: (0, j)),
        ),
        compiler_params=pltpu.CompilerParams(
            dimension_semantics=("parallel",),
            vmem_limit_bytes=_vmem_limit(footprint)),
    )(x_emb, wcT_pad, bc_pad)


# ---------------------------------------------------------------------------
# Pallas kernel: per-(batch, source, time-tile) grouped 1D conv + bias add.
# ---------------------------------------------------------------------------
def _conv1d_kernel(xb_ref, xh_ref, w_ref, b_ref, o_ref, scr_ref, *,
                   kernel_size, stride, dilation, groups, t_tile, path):
    K = kernel_size
    c_in = xb_ref.shape[2]
    c_out = o_ref.shape[2]
    cin_g = c_in // groups
    cout_g = c_out // groups

    if path == "depthwise":
        # groups == C_in == C_out, stride == 1:
        #   y[c,t] = b[c] + sum_k w[c,k] * x[c, t + k*dilation]   (VPU only)
        scr_ref[...] = jnp.broadcast_to(b_ref[0], (c_out, t_tile)).astype(jnp.float32)
        for k in range(K):
            start = k * dilation
            body_w = t_tile - start
            wk = w_ref[0, :, k:k + 1]                               # (C, 1)
            if body_w > 0:
                scr_ref[:, :body_w] += wk * xb_ref[0, 0, :, start:t_tile].astype(
                    jnp.float32)
            if start > 0:
                scr_ref[:, body_w:] += wk * xh_ref[0, 0, :, :start].astype(
                    jnp.float32)
        o_ref[0, 0, :, :] = scr_ref[...].astype(o_ref.dtype)

    elif path == "direct":
        # groups == 1, stride == 1, cin_g >= 128: K accumulated MXU dots on
        # shifted input slices; no im2col slab, no VMEM round-trip.
        scr_ref[...] = jnp.broadcast_to(b_ref[0], (c_out, t_tile)).astype(jnp.float32)
        for k in range(K):
            start = k * dilation
            body_w = t_tile - start
            wk = w_ref[0, :, k * cin_g:(k + 1) * cin_g]             # (C_out, C_in)
            if body_w > 0:
                scr_ref[:, :body_w] += jnp.dot(
                    wk, xb_ref[0, 0, :, start:t_tile],
                    preferred_element_type=jnp.float32)
            if start > 0:
                scr_ref[:, body_w:] += jnp.dot(
                    wk, xh_ref[0, 0, :, :start],
                    preferred_element_type=jnp.float32)
        o_ref[0, 0, :, :] = scr_ref[...].astype(o_ref.dtype)

    else:  # "slab": in-kernel im2col + one MXU dot per group (small cin_g)
        if stride == 1:
            for g in range(groups):
                lo, hi = g * cin_g, (g + 1) * cin_g
                for k in range(K):
                    start = k * dilation
                    body_w = t_tile - start
                    r0 = k * cin_g
                    if body_w > 0:
                        scr_ref[r0:r0 + cin_g, :body_w] = xb_ref[0, 0, lo:hi,
                                                                 start:t_tile]
                    if start > 0:
                        scr_ref[r0:r0 + cin_g, body_w:] = xh_ref[0, 0, lo:hi, :start]
                wg = w_ref[0, g * cout_g:(g + 1) * cout_g, :]
                bg = b_ref[0, g * cout_g:(g + 1) * cout_g, :]
                yg = jnp.dot(wg, scr_ref[...],
                             preferred_element_type=jnp.float32) + bg
                o_ref[0, 0, g * cout_g:(g + 1) * cout_g, :] = yg.astype(o_ref.dtype)
        else:
            # stride > 1 fallback: contiguous window + reshape-decimation.
            # TODO(synk): do the decimation in the DMA (strided copy) instead.
            x = jnp.concatenate([xb_ref[0, 0], xh_ref[0, 0]], axis=-1)
            for g in range(groups):
                lo, hi = g * cin_g, (g + 1) * cin_g
                for k in range(K):
                    start = k * dilation
                    xs = lax.slice(x, (lo, start), (hi, start + t_tile * stride))
                    scr_ref[k * cin_g:(k + 1) * cin_g, :] = xs.reshape(
                        cin_g, t_tile, stride)[:, :, 0]
                wg = w_ref[0, g * cout_g:(g + 1) * cout_g, :]
                bg = b_ref[0, g * cout_g:(g + 1) * cout_g, :]
                yg = jnp.dot(wg, scr_ref[...],
                             preferred_element_type=jnp.float32) + bg
                o_ref[0, 0, g * cout_g:(g + 1) * cout_g, :] = yg.astype(o_ref.dtype)


def pallas_generated_conv1d(x, kernel_lane, bias, *, kernel_size, stride, padding,
                            dilation, groups, t_tile_target=2048,
                            vmem_budget_bytes=36 * 1024 * 1024):
    """
    x:           (B, S, C_in, T_in)
    kernel_lane: (S, C_out, K*C_in//groups)  contraction dim last (lane-dense),
                 k-major / c_in-minor.
    bias:        (S, C_out)  (zeros when the module has bias=False)
    returns      (B, S, C_out, T_out)
    """
    B, S, C_in, T_in = x.shape
    _, C_out, KC = kernel_lane.shape
    K = kernel_size
    cin_g = C_in // groups
    assert KC == K * cin_g

    T_out = (T_in + 2 * padding - dilation * (K - 1) - 1) // stride + 1
    H = dilation * (K - 1)                         # receptive-field halo (elements)
    HB = 128 * max(1, pl.cdiv(H, 128))             # lane-aligned halo block

    # --- kernel path selection ------------------------------------------------
    depthwise = (groups == C_in) and (C_out == C_in) and (stride == 1)
    direct = (not depthwise) and (groups == 1) and (stride == 1) and (cin_g >= 128)
    path = "depthwise" if depthwise else ("direct" if direct else "slab")
    use_slab = path == "slab"
    # TODO(synk): grouped convs with 1 < groups ~ C_in and stride>1 still unroll
    #             the Python group loop (compile-time heavy for very large groups).

    # Model dtype for weights (bf16 MXU when activations are bf16, else f32).
    w_dtype = jnp.bfloat16 if x.dtype == jnp.bfloat16 else jnp.float32
    kernel_lane = kernel_lane.astype(w_dtype)
    bias3 = bias.reshape(S, C_out, 1).astype(jnp.float32)

    # --- time-tile sizing against a VMEM budget -------------------------------
    x_elt = x.dtype.itemsize
    w_elt = jnp.dtype(w_dtype).itemsize
    fixed = (2 * C_in * HB * x_elt            # halo double buffer
             + 2 * C_out * KC * w_elt         # per-source weights double buffer
             + 2 * C_out * 4)                 # per-source bias double buffer
    per_t = (2 * C_in * stride * x_elt        # body double buffer
             + 2 * C_out * x_elt              # output double buffer
             + (K * cin_g * x_elt if use_slab else C_out * 4))   # scratch
    t_fit = max(128, ((vmem_budget_bytes - fixed) // max(per_t, 1)) // 128 * 128)

    t_tile = min(_round_up(T_out, 128),
                 max(_round_up(t_tile_target, 128), 8 * HB),   # amortize halo re-read
                 t_fit)
    t_tile = _round_up(max(t_tile, 128), HB)   # body length = multiple of halo block
    LB = t_tile * stride                       # input body block length
    n_t = pl.cdiv(T_out, t_tile)
    T_alloc = n_t * LB + HB
    T_out_pad = n_t * t_tile
    hb_per_lb = LB // HB

    # Zero-padded, tile-rounded input buffer (conv padding + halo round-up).
    # TODO(synk): fold this padding into the kernel (manual DMA with clamped
    # offsets) to remove one extra HBM read+write of x.
    x_alloc = jnp.zeros((B, S, C_in, T_alloc), x.dtype)
    take = min(T_in, T_alloc - padding)
    x_alloc = x_alloc.at[..., padding:padding + take].set(x[..., :take])

    if use_slab:
        scratch = [pltpu.VMEM((K * cin_g, t_tile), x.dtype)]
    else:
        scratch = [pltpu.VMEM((C_out, t_tile), jnp.float32)]

    footprint = fixed + per_t * t_tile
    kern = functools.partial(
        _conv1d_kernel, kernel_size=K, stride=stride, dilation=dilation,
        groups=groups, t_tile=t_tile, path=path)

    out = pl.pallas_call(
        kern,
        out_shape=jax.ShapeDtypeStruct((B, S, C_out, T_out_pad), x.dtype),
        grid_spec=pltpu.PrefetchScalarGridSpec(
            num_scalar_prefetch=0,
            grid=(B, S, n_t),
            in_specs=[
                # time-tiled input body (non-overlapping, auto double-buffered)
                pl.BlockSpec((1, 1, C_in, LB), lambda b, s, j: (b, s, 0, j)),
                # right halo: the HB lanes immediately after the body
                pl.BlockSpec((1, 1, C_in, HB),
                             lambda b, s, j: (b, s, 0, (j + 1) * hb_per_lb)),
                # generated weights & bias: ONE source per block (re-DMA'd only
                # when s changes; keeps the resident footprint small)
                pl.BlockSpec((1, C_out, KC), lambda b, s, j: (s, 0, 0)),
                pl.BlockSpec((1, C_out, 1), lambda b, s, j: (s, 0, 0)),
            ],
            out_specs=pl.BlockSpec((1, 1, C_out, t_tile),
                                   lambda b, s, j: (b, s, 0, j)),
            scratch_shapes=scratch,
        ),
        compiler_params=pltpu.CompilerParams(
            dimension_semantics=("parallel", "parallel", "parallel"),
            vmem_limit_bytes=_vmem_limit(footprint)),
    )(x_alloc, x_alloc, kernel_lane, bias3)

    return out[..., :T_out]


# ---------------------------------------------------------------------------
# Parameter containers: raw init + one-time generator layout preparation
# ---------------------------------------------------------------------------
def init_params(key, *, in_channels, out_channels, kernel_size, groups,
                embed_dim, bottleneck_channels):
    """Deterministic synthetic init (PyTorch-Linear-style uniform)."""
    def lin(k, out_f, in_f):
        kw, kb = jax.random.split(k)
        bound = 1.0 / jnp.sqrt(in_f)
        w = jax.random.uniform(kw, (out_f, in_f), jnp.float32, -bound, bound)
        b = jax.random.uniform(kb, (out_f,), jnp.float32, -bound, bound)
        return w, b

    k1, k2, k3 = jax.random.split(key, 3)
    gen_out = out_channels * (in_channels // groups) * kernel_size
    return {
        "bottleneck": lin(k1, bottleneck_channels, embed_dim),
        "linear": lin(k2, gen_out, bottleneck_channels),
        "linear_bias": lin(k3, out_channels, bottleneck_channels),
    }


def prepare_generator(params, *, in_channels, out_channels, kernel_size, groups,
                      bias, n_tile=8192):
    """One-time layout work: k-major row permutation of the kernel generator,
    concat with the bias generator, transpose + pad to the paramgen tiling.
    Removes all per-forward layout passes."""
    C_in, C_out, K = in_channels, out_channels, kernel_size
    cin_g = C_in // groups
    gen_out = C_out * cin_g * K

    wb, bb = params["bottleneck"]
    wl, bl = params["linear"]
    wlb, blb = params["linear_bias"]
    Bn = wb.shape[0]

    # Permute generator rows so the generated flat kernel comes out in k-major
    # (C_out, K, cin_g) order -- the lane-dense layout the conv kernel consumes.
    perm = jnp.arange(gen_out).reshape(C_out, cin_g, K).transpose(0, 2, 1).reshape(-1)
    wl_p, bl_p = wl[perm], bl[perm]

    if bias:
        w_cat = jnp.concatenate([wl_p, wlb], axis=0)     # (gen_out + C_out, Bn)
        b_cat = jnp.concatenate([bl_p, blb], axis=0)
    else:
        w_cat, b_cat = wl_p, bl_p
    N = w_cat.shape[0]

    TN = min(_round_up(N, 128), _round_up(n_tile, 128))
    N_pad = _round_up(N, TN)
    wcT = jnp.zeros((Bn, N_pad), jnp.float32).at[:, :N].set(
        w_cat.T.astype(jnp.float32))
    bcT = jnp.zeros((1, N_pad), jnp.float32).at[:, :N].set(
        b_cat.reshape(1, N).astype(jnp.float32))

    return {
        "wbT": wb.T.astype(jnp.float32),                 # (E, Bn)
        "bb": bb.reshape(1, Bn).astype(jnp.float32),
        "wcT": wcT, "bcT": bcT,
        "gen_out": gen_out, "tile_n": TN, "n_cat": N,
    }


def conv1d_generated_forward(prepared, x, embedding, *, in_channels, out_channels,
                             kernel_size, stride, padding, dilation, groups,
                             bias, n_sources):
    """
    x:         (B, n_sources, C_in, T_in)
    embedding: (n_sources, embed_dim)
    returns    (B, n_sources, C_out, T_out)
    """
    S = n_sources
    C_in, C_out, K = in_channels, out_channels, kernel_size
    cin_g = C_in // groups
    gen_out = prepared["gen_out"]

    # Bottleneck hoisted out of the per-tile paramgen body (tiny (S,E)@(E,Bn)).
    x_emb = embedding.astype(jnp.float32) @ prepared["wbT"] + prepared["bb"]

    # Tiled paramgen: [kernel-generator ; bias-generator] in one pallas_call.
    gen = pallas_generate_params(x_emb, prepared["wcT"], prepared["bcT"],
                                 prepared["tile_n"])              # (S, N_pad)

    kernel_lane = gen[:, :gen_out].reshape(S, C_out, K * cin_g)   # already k-major
    if bias:
        bvec = gen[:, gen_out:gen_out + C_out]
    else:
        bvec = jnp.zeros((S, C_out), jnp.float32)

    return pallas_generated_conv1d(
        x, kernel_lane, bvec, kernel_size=K, stride=stride, padding=padding,
        dilation=dilation, groups=groups)


# ---------------------------------------------------------------------------
# Pure-JAX reference (mirrors the PyTorch F.conv1d path)
# ---------------------------------------------------------------------------
def reference_forward(params, x, embedding, *, in_channels, out_channels,
                      kernel_size, stride, padding, dilation, groups,
                      bias, n_sources):
    B, S, C_in, T_in = x.shape
    wb, bb = params["bottleneck"]
    wk, bk = params["linear"]
    wbi, bbi = params["linear_bias"]

    x_emb = embedding @ wb.T + bb
    kernel = (x_emb @ wk.T + bk).reshape(
        n_sources * out_channels, in_channels // groups, kernel_size)

    xin = x.reshape(B, S * C_in, T_in)
    y = lax.conv_general_dilated(
        xin, kernel,
        window_strides=(stride,),
        padding=[(padding, padding)],
        rhs_dilation=(dilation,),
        dimension_numbers=("NCH", "OIH", "NCH"),
        feature_group_count=n_sources * groups,
        precision=lax.Precision.HIGHEST)
    y = y.reshape(B, n_sources, out_channels, -1)
    if bias:
        bvec = (x_emb @ wbi.T + bbi).reshape(1, n_sources, out_channels, 1)
        y = y + bvec
    return y


# ---------------------------------------------------------------------------
if __name__ == "__main__":
    embed_dim, bottleneck_channels = 16, 32
    tests = [
        # (name, cfg, batch, T_in)
        ("small grouped=1 conv (im2col slab path)",
         dict(in_channels=4, out_channels=8, kernel_size=3, stride=1, padding=1,
              dilation=1, groups=1, bias=True, n_sources=2), 2, 16),
        ("depthwise dilated conv (VPU path)",
         dict(in_channels=8, out_channels=8, kernel_size=3, stride=1, padding=2,
              dilation=2, groups=8, bias=False, n_sources=2), 2, 16),
        ("wide conv cin>=128 (direct MXU path)",
         dict(in_channels=128, out_channels=128, kernel_size=3, stride=1, padding=1,
              dilation=1, groups=1, bias=True, n_sources=2), 2, 256),
    ]

    key = jax.random.PRNGKey(0)
    with jax.default_matmul_precision("float32"):
        for name, cfg, B, T_in in tests:
            key, k_p, k_x, k_e = jax.random.split(key, 4)
            params = init_params(
                k_p, in_channels=cfg["in_channels"],
                out_channels=cfg["out_channels"],
                kernel_size=cfg["kernel_size"], groups=cfg["groups"],
                embed_dim=embed_dim, bottleneck_channels=bottleneck_channels)
            prepared = prepare_generator(
                params, in_channels=cfg["in_channels"],
                out_channels=cfg["out_channels"],
                kernel_size=cfg["kernel_size"], groups=cfg["groups"],
                bias=cfg["bias"])

            x = jax.random.normal(
                k_x, (B, cfg["n_sources"], cfg["in_channels"], T_in), jnp.float32)
            embedding = jax.random.normal(
                k_e, (cfg["n_sources"], embed_dim), jnp.float32)

            out = conv1d_generated_forward(prepared, x, embedding, **cfg)
            out = jax.block_until_ready(out)
            ref = reference_forward(params, x, embedding, **cfg)

            assert out.shape == ref.shape, (name, out.shape, ref.shape)
            assert jnp.allclose(out, ref, atol=2e-3, rtol=2e-3), (
                f"mismatch vs reference: {name}")

    print("KERNEL_OK")
</pallas_src>

<mosaic_0001>
module attributes {stable_mosaic.version = 11 : i64} {
  func.func @_paramgen_kernel(%arg0: i32, %arg1: memref<2x32xf32, #tpu.memory_space<vmem>>, %arg2: memref<32x128xf32, #tpu.memory_space<vmem>>, %arg3: memref<1x128xf32, #tpu.memory_space<vmem>>, %arg4: memref<2x128xf32, #tpu.memory_space<vmem>>) attributes {dimension_semantics = [#tpu.dimension_semantics<parallel>], iteration_bounds = array<i64: 1>, scalar_prefetch = 0 : i64, scratch_operands = 0 : i64, tpu.core_type = #tpu.core_type<tc>, window_params = [{pipeline_mode = #tpu.pipeline_mode<synchronous>, transform_indices = @transform_0, window_bounds = array<i64: 2, 32>}, {transform_indices = @transform_1, window_bounds = array<i64: 32, 128>}, {transform_indices = @transform_2, window_bounds = array<i64: 1, 128>}, {transform_indices = @transform_3, window_bounds = array<i64: 2, 128>}]} {
    %c0 = arith.constant 0 : index
    %c0_0 = arith.constant 0 : index
    %0 = vector.load %arg1[%c0, %c0_0] : memref<2x32xf32, #tpu.memory_space<vmem>>, vector<2x32xf32>
    %c0_1 = arith.constant 0 : index
    %c0_2 = arith.constant 0 : index
    %1 = vector.load %arg2[%c0_1, %c0_2] : memref<32x128xf32, #tpu.memory_space<vmem>>, vector<32x128xf32>
    %cst = arith.constant dense<0.000000e+00> : vector<2x128xf32>
    %2 = tpu.matmul %0, %1, %cst {dimension_numbers = #tpu.dot_dimension_numbers<[1], [0], [0], [1], [0, 0, 1, 1], [], []>, precision = #tpu.contract_precision<fp32>} : vector<2x32xf32>, vector<32x128xf32>, vector<2x128xf32> -> vector<2x128xf32>
    %c0_3 = arith.constant 0 : index
    %c0_4 = arith.constant 0 : index
    %3 = vector.load %arg3[%c0_3, %c0_4] : memref<1x128xf32, #tpu.memory_space<vmem>>, vector<1x128xf32>
    %4 = vector.broadcast %3 : vector<1x128xf32> to vector<2x128xf32>
    %5 = arith.addf %2, %4 : vector<2x128xf32>
    %c0_5 = arith.constant 0 : index
    %c0_6 = arith.constant 0 : index
    %6 = vector.load %arg4[%c0_5, %c0_6] : memref<2x128xf32, #tpu.memory_space<vmem>>, vector<2x128xf32>
    tpu.vector_store %arg4[%c0_5, %c0_6], %5 {strides = array<i32>} : memref<2x128xf32, #tpu.memory_space<vmem>>, vector<2x128xf32>,
    return
  }
  func.func @transform_0(%arg0: i32) -> (i32, i32) {
    %c0_i32 = arith.constant 0 : i32
    %c0_i32_0 = arith.constant 0 : i32
    %c0_i32_1 = arith.constant 0 : i32
    return %c0_i32, %c0_i32_0 : i32, i32
  }
  func.func @transform_1(%arg0: i32) -> (i32, i32) {
    %c0_i32 = arith.constant 0 : i32
    %c0_i32_0 = arith.constant 0 : i32
    return %c0_i32, %arg0 : i32, i32
  }
  func.func @transform_2(%arg0: i32) -> (i32, i32) {
    %c0_i32 = arith.constant 0 : i32
    %c0_i32_0 = arith.constant 0 : i32
    return %c0_i32, %arg0 : i32, i32
  }
  func.func @transform_3(%arg0: i32) -> (i32, i32) {
    %c0_i32 = arith.constant 0 : i32
    %c0_i32_0 = arith.constant 0 : i32
    return %c0_i32, %arg0 : i32, i32
  }
}

</mosaic_0001>

<llo_original>
// kernel: tpu_custom_call.1
$region0: #{tpu_custom_call.1}
  #allocation0 [shape = 'u32[]', space=smem, size = 0x4, offset = 0x4, fixed_abs, tag = 'smem constant byte address 0x4 - core index']
  #allocation1 [shape = 'u32[72,128]{1,0:T(1,128)}', space=vmem, size = 0x9000, scoped, tag = 'internal scratch']
  %s0 = inlined_call_operand.hbm [shape: f32[2,32], index: 0, kind: input, shape index: {}]
  %s1 = inlined_call_operand.hbm [shape: f32[32,128], index: 1, kind: input, shape index: {}]
  %s2 = inlined_call_operand.vmem [shape: f32[1,128], index: 2, kind: input, shape index: {}]
  %s3 = inlined_call_operand.hbm [shape: f32[2,128], index: 3, kind: output, shape index: {}]
  %s4 = sld [smem:[#allocation0]]
  $region30: #{tpu_custom_call.1} parent=0
    _
  %s6 = ssub.s32 1, %s4
  %s7 = scalar_select 0, %s6, %s4
  $region1: #{tpu_custom_call.1} parent=0
    #allocation2 [shape = 'u8[1024]{0}', space=vmem, size = 0x400, scoped, tag = 'input window, operand 0, single buffered']
    #allocation3 [shape = 's32[1]{0}', space=sflag, size = 0x4, scoped, tag = 'scoped memory for tpu_custom_call.1']
    #allocation4 [shape = 's32[1]{0}', space=sflag, size = 0x4, scoped, tag = 'scoped memory for tpu_custom_call.1']
    #allocation5 [shape = 'u8[16384]{0}', space=vmem, size = 0x4000, scoped, tag = 'input window, operand 1, single buffered']
    #allocation6 [shape = 's32[1]{0}', space=sflag, size = 0x4, scoped, tag = 'scoped memory for tpu_custom_call.1']
    #allocation7 [shape = 'u8[1024]{0}', space=vmem, size = 0x400, scoped, tag = 'output window, operand 0, single buffered']
    %8 = vsyncpa [#allocation3], 0
    %9 = vsyncpa [#allocation6], 0
    %10 = vsyncpa [#allocation4], 0
    // Predicated region
    $region2: #{tpu_custom_call.1} parent=1 // pred_check
      _
    $region3: #{tpu_custom_call.1} parent=1 // pred_check_branch
      %12 = sbr.rel (0) target = $region5
    $region4: #{tpu_custom_call.1} parent=1 // pred_region
      %14 = vsyncadd [#allocation3], 0
      %s16 = sshll.u32 %s0, 4
      %s17 = int_to_ptr.hbm [resolvable:$true] %s16
      %s18 = sshll.u32 [#allocation2], 4
      %s19 = int_to_ptr.vmem [resolvable:$true] %s18
      %21 = dma.hbm_to_vmem [thread:$0]  %s17, 32, %s19, [#allocation3]
    $region5: #{tpu_custom_call.1} parent=1 // pred_fallthru
      _
    // Predicated region
    $region6: #{tpu_custom_call.1} parent=1 // pred_check
      _
    $region7: #{tpu_custom_call.1} parent=1 // pred_check_branch
      %23 = sbr.rel (0) target = $region9
    $region8: #{tpu_custom_call.1} parent=1 // pred_region
      %25 = vsyncadd [#allocation6], 0
      %s26 = sshll.u32 %s1, 4
      %s27 = int_to_ptr.hbm [resolvable:$true] %s26
      %s28 = sshll.u32 [#allocation5], 4
      %s29 = int_to_ptr.vmem [resolvable:$true] %s28
      %34 = dma.hbm_to_vmem [thread:$0]  %s27, 512, %s29, [#allocation6], 128, 128, 8
    $region9: #{tpu_custom_call.1} parent=1 // pred_fallthru
      _
    // Predicated region
    $region10: #{tpu_custom_call.1} parent=1 // pred_check
      _
    $region11: #{tpu_custom_call.1} parent=1 // pred_check_branch
      %36 = sbr.rel (0) target = $region13
    $region12: #{tpu_custom_call.1} parent=1 // pred_region
      _
    $region13: #{tpu_custom_call.1} parent=1 // pred_fallthru
      _
    // Predicated region
    $region14: #{tpu_custom_call.1} parent=1 // pred_check
      _
    $region15: #{tpu_custom_call.1} parent=1 // pred_check_branch
      %38 = sbr.rel (0) target = $region17
    $region16: #{tpu_custom_call.1} parent=1 // pred_region
      %40 = dma.done [#allocation3], 32
    $region17: #{tpu_custom_call.1} parent=1 // pred_fallthru
      _
    // Predicated region
    $region18: #{tpu_custom_call.1} parent=1 // pred_check
      _
    $region19: #{tpu_custom_call.1} parent=1 // pred_check_branch
      %42 = sbr.rel (0) target = $region21
    $region20: #{tpu_custom_call.1} parent=1 // pred_region
      %44 = dma.done [#allocation6], 512
    $region21: #{tpu_custom_call.1} parent=1 // pred_fallthru
      _
    %v45 = vld [vmem:[#allocation2] sm:$0x3]
    %v46 = vld [vmem:[#allocation5] sm:$0xff]
    %v47 = vld [vmem:[#allocation5 + $0x8] sm:$0xff]
    %v48 = vld [vmem:[#allocation5 + $0x10] sm:$0xff]
    %v49 = vld [vmem:[#allocation5 + $0x18] sm:$0xff]
    %v50 = vld [vmem:[%s2] sm:$0x1]
    %v52 = vperm.slane %v50, 0
    %vm54 = vcmask 261120
    %v56 = vsel %vm54, %v45, 0
    %58 = vmatpush.msra.mxu0 0.0
    %59 = vmatpush.msra.mxu0 0.0
    %60 = vmatpush.msra.mxu0 0.0
    %61 = vmatpush.msra.mxu0 0.0
    %62 = vmatpush.msra.mxu0 0.0
    %63 = vmatpush.msra.mxu0 0.0
    %64 = vmatpush.msra.mxu0 0.0
    %65 = vmatpush.msra.mxu0 0.0
    %66 = vmatpush.msra.mxu0 0.0
    %67 = vmatpush.msra.mxu0 0.0
    %68 = vmatpush.msra.mxu0 0.0
    %69 = vmatpush.msra.mxu0 0.0
    %v70 = vand.u32 %v49, 4294901760
    %71 = vmatpush.msra.mxu0 %v70
    %v72 = vand.u32 %v48, 4294901760
    %73 = vmatpush.msra.mxu0 %v72
    %v74 = vand.u32 %v47, 4294901760
    %75 = vmatpush.msra.mxu0 %v74
    %v76 = vand.u32 %v46, 4294901760
    %77 = vmatpush.msra.mxu0 %v76
    %v78 = vand.u32 %v56, 4294901760
    %v79 = vsub.f32 %v56, %v78
    %v80 = vand.u32 %v79, 4294901760
    %v81 = vsub.f32 %v79, %v80
    %v82 = vand.u32 %v81, 4294901760
    %83 = vmatmul.f32.gmra.mxu0 %v82
    %v84 = vpop.f32.mrf.mxu0
    %v85 = vadd.f32 %v52, %v84
    %86 = vdwg.mxu0
    %87 = vmatpush.msra.mxu0 0.0
    %88 = vmatpush.msra.mxu0 0.0
    %89 = vmatpush.msra.mxu0 0.0
    %90 = vmatpush.msra.mxu0 0.0
    %91 = vmatpush.msra.mxu0 0.0
    %92 = vmatpush.msra.mxu0 0.0
    %93 = vmatpush.msra.mxu0 0.0
    %94 = vmatpush.msra.mxu0 0.0
    %95 = vmatpush.msra.mxu0 0.0
    %96 = vmatpush.msra.mxu0 0.0
    %97 = vmatpush.msra.mxu0 0.0
    %98 = vmatpush.msra.mxu0 0.0
    %v99 = vand.u32 %v49, 4294901760
    %v100 = vsub.f32 %v49, %v99
    %v101 = vand.u32 %v100, 4294901760
    %v102 = vsub.f32 %v100, %v101
    %v103 = vand.u32 %v102, 4294901760
    %104 = vmatpush.msra.mxu0 %v103
    %v105 = vand.u32 %v48, 4294901760
    %v106 = vsub.f32 %v48, %v105
    %v107 = vand.u32 %v106, 4294901760
    %v108 = vsub.f32 %v106, %v107
    %v109 = vand.u32 %v108, 4294901760
    %110 = vmatpush.msra.mxu0 %v109
    %v111 = vand.u32 %v47, 4294901760
    %v112 = vsub.f32 %v47, %v111
    %v113 = vand.u32 %v112, 4294901760
    %v114 = vsub.f32 %v112, %v113
    %v115 = vand.u32 %v114, 4294901760
    %116 = vmatpush.msra.mxu0 %v115
    %v117 = vand.u32 %v46, 4294901760
    %v118 = vsub.f32 %v46, %v117
    %v119 = vand.u32 %v118, 4294901760
    %v120 = vsub.f32 %v118, %v119
    %v121 = vand.u32 %v120, 4294901760
    %122 = vmatpush.msra.mxu0 %v121
    %v123 = vand.u32 %v56, 4294901760
    %124 = vmatmul.f32.gmra.mxu0 %v123
    %v125 = vpop.f32.mrf.mxu0
    %v126 = vadd.f32 %v85, %v125
    %127 = vdwg.mxu0
    %128 = vmatpush.msra.mxu0 0.0
    %129 = vmatpush.msra.mxu0 0.0
    %130 = vmatpush.msra.mxu0 0.0
    %131 = vmatpush.msra.mxu0 0.0
    %132 = vmatpush.msra.mxu0 0.0
    %133 = vmatpush.msra.mxu0 0.0
    %134 = vmatpush.msra.mxu0 0.0
    %135 = vmatpush.msra.mxu0 0.0
    %136 = vmatpush.msra.mxu0 0.0
    %137 = vmatpush.msra.mxu0 0.0
    %138 = vmatpush.msra.mxu0 0.0
    %139 = vmatpush.msra.mxu0 0.0
    %v140 = vand.u32 %v49, 4294901760
    %v141 = vsub.f32 %v49, %v140
    %142 = vmatpush.msra.mxu0 %v141
    %v143 = vand.u32 %v48, 4294901760
    %v144 = vsub.f32 %v48, %v143
    %145 = vmatpush.msra.mxu0 %v144
    %v146 = vand.u32 %v47, 4294901760
    %v147 = vsub.f32 %v47, %v146
    %148 = vmatpush.msra.mxu0 %v147
    %v149 = vand.u32 %v46, 4294901760
    %v150 = vsub.f32 %v46, %v149
    %151 = vmatpush.msra.mxu0 %v150
    %v152 = vand.u32 %v56, 4294901760
    %v153 = vsub.f32 %v56, %v152
    %154 = vmatmul.f32.gmra.mxu0 %v153
    %v155 = vpop.f32.mrf.mxu0
    %v156 = vadd.f32 %v126, %v155
    %157 = vdwg.mxu0
    %158 = vmatpush.msra.mxu0 0.0
    %159 = vmatpush.msra.mxu0 0.0
    %160 = vmatpush.msra.mxu0 0.0
    %161 = vmatpush.msra.mxu0 0.0
    %162 = vmatpush.msra.mxu0 0.0
    %163 = vmatpush.msra.mxu0 0.0
    %164 = vmatpush.msra.mxu0 0.0
    %165 = vmatpush.msra.mxu0 0.0
    %166 = vmatpush.msra.mxu0 0.0
    %167 = vmatpush.msra.mxu0 0.0
    %168 = vmatpush.msra.mxu0 0.0
    %169 = vmatpush.msra.mxu0 0.0
    %v170 = vand.u32 %v49, 4294901760
    %171 = vmatpush.msra.mxu0 %v170
    %v172 = vand.u32 %v48, 4294901760
    %173 = vmatpush.msra.mxu0 %v172
    %v174 = vand.u32 %v47, 4294901760
    %175 = vmatpush.msra.mxu0 %v174
    %v176 = vand.u32 %v46, 4294901760
    %177 = vmatpush.msra.mxu0 %v176
    %v178 = vand.u32 %v56, 4294901760
    %v179 = vsub.f32 %v56, %v178
    %v180 = vand.u32 %v179, 4294901760
    %181 = vmatmul.f32.gmra.mxu0 %v180
    %v182 = vpop.f32.mrf.mxu0
    %v183 = vadd.f32 %v156, %v182
    %184 = vdwg.mxu0
    %185 = vmatpush.msra.mxu0 0.0
    %186 = vmatpush.msra.mxu0 0.0
    %187 = vmatpush.msra.mxu0 0.0
    %188 = vmatpush.msra.mxu0 0.0
    %189 = vmatpush.msra.mxu0 0.0
    %190 = vmatpush.msra.mxu0 0.0
    %191 = vmatpush.msra.mxu0 0.0
    %192 = vmatpush.msra.mxu0 0.0
    %193 = vmatpush.msra.mxu0 0.0
    %194 = vmatpush.msra.mxu0 0.0
    %195 = vmatpush.msra.mxu0 0.0
    %196 = vmatpush.msra.mxu0 0.0
    %v197 = vand.u32 %v49, 4294901760
    %v198 = vsub.f32 %v49, %v197
    %v199 = vand.u32 %v198, 4294901760
    %200 = vmatpush.msra.mxu0 %v199
    %v201 = vand.u32 %v48, 4294901760
    %v202 = vsub.f32 %v48, %v201
    %v203 = vand.u32 %v202, 4294901760
    %204 = vmatpush.msra.mxu0 %v203
    %v205 = vand.u32 %v47, 4294901760
    %v206 = vsub.f32 %v47, %v205
    %v207 = vand.u32 %v206, 4294901760
    %208 = vmatpush.msra.mxu0 %v207
    %v209 = vand.u32 %v46, 4294901760
    %v210 = vsub.f32 %v46, %v209
    %v211 = vand.u32 %v210, 4294901760
    %212 = vmatpush.msra.mxu0 %v211
    %v213 = vand.u32 %v56, 4294901760
    %214 = vmatmul.f32.gmra.mxu0 %v213
    %v215 = vpop.f32.mrf.mxu0
    %v216 = vadd.f32 %v183, %v215
    %217 = vdwg.mxu0
    %218 = vmatpush.msra.mxu0 0.0
    %219 = vmatpush.msra.mxu0 0.0
    %220 = vmatpush.msra.mxu0 0.0
    %221 = vmatpush.msra.mxu0 0.0
    %222 = vmatpush.msra.mxu0 0.0
    %223 = vmatpush.msra.mxu0 0.0
    %224 = vmatpush.msra.mxu0 0.0
    %225 = vmatpush.msra.mxu0 0.0
    %226 = vmatpush.msra.mxu0 0.0
    %227 = vmatpush.msra.mxu0 0.0
    %228 = vmatpush.msra.mxu0 0.0
    %229 = vmatpush.msra.mxu0 0.0
    %v230 = vand.u32 %v49, 4294901760
    %231 = vmatpush.msra.mxu0 %v230
    %v232 = vand.u32 %v48, 4294901760
    %233 = vmatpush.msra.mxu0 %v232
    %v234 = vand.u32 %v47, 4294901760
    %235 = vmatpush.msra.mxu0 %v234
    %v236 = vand.u32 %v46, 4294901760
    %237 = vmatpush.msra.mxu0 %v236
    %v238 = vand.u32 %v56, 4294901760
    %239 = vmatmul.f32.gmra.mxu0 %v238
    %v240 = vpop.f32.mrf.mxu0
    %v241 = vadd.f32 %v216, %v240
    %242 = vdwg.mxu0
    %243 = vst [vmem:[#allocation7] sm:$0x3] %v241
    // Predicated region
    $region22: #{tpu_custom_call.1} parent=1 // pred_check
      _
    $region23: #{tpu_custom_call.1} parent=1 // pred_check_branch
      %245 = sbr.rel (0) target = $region25
    $region24: #{tpu_custom_call.1} parent=1 // pred_region
      %247 = vsyncadd [#allocation4], 0
      %s249 = sshll.u32 [#allocation7], 4
      %s250 = int_to_ptr.vmem [resolvable:$true] %s249
      %s251 = sshll.u32 %s3, 4
      %s252 = int_to_ptr.hbm [resolvable:$true] %s251
      %254 = dma.vmem_to_hbm [thread:$0]  %s250, 32, %s252, [#allocation4]
    $region25: #{tpu_custom_call.1} parent=1 // pred_fallthru
      _
    // Predicated region
    $region26: #{tpu_custom_call.1} parent=1 // pred_check
      _
    $region27: #{tpu_custom_call.1} parent=1 // pred_check_branch
      %256 = sbr.rel (0) target = $region29
    $region28: #{tpu_custom_call.1} parent=1 // pred_region
      %258 = dma.done [#allocation4], 32
    $region29: #{tpu_custom_call.1} parent=1 // pred_fallthru
      _
    %259 = vsyncpa [#allocation3], 1
    %260 = vsyncpa [#allocation6], 1
    %261 = vsyncpa [#allocation4], 1

</llo_original>
